<compile_context>
chip_gen: v7x
topology: tpu7x:2x2x1
jax: 0.10.0
libtpu: 0.0.40
codegen_flags: <defaults>
</compile_context>

<pallas_src>
import functools

import jax
import jax.numpy as jnp
from jax import lax
from jax.experimental import pallas as pl
from jax.experimental.pallas import tpu as pltpu

_ATANH_HALF = 0.5493061443340548  # atanh(0.5), f32-precise threshold


def _state_kernel(is_discrete,
                  w_ref,        # (3S, S)  fused, transposed weight
                  b_ref,        # (1, S)   bias row
                  x_ref,        # (1, 3S)  [p^T, c^T, prev^T]
                  pa_str_ref,   # (1,)     SMEM scalar
                  pc_str_ref,   # (1,)     SMEM scalar
                  out_ref):     # (1, S)
    three_s = x_ref.shape[1]
    s = three_s // 3
    pa_s = pa_str_ref[0]
    pc_s = pc_str_ref[0]

    # Per-segment strength scaling of the fused RHS: pure in-lane VPU work.
    col = lax.broadcasted_iota(jnp.int32, (1, three_s), 1)
    scale = jnp.where(col < s, pa_s,
                      jnp.where(col < 2 * s, pc_s, jnp.float32(1.0)))
    x = x_ref[...] * scale

    # Single fused MXU matmul with f32 accumulation:
    #   (1, 3S) @ (3S, S) -> (1, S)  ==  (W_p p*sp + W_q c*sc + W_s prev)^T
    z = jnp.dot(x, w_ref[...], preferred_element_type=jnp.float32) + b_ref[...]

    if is_discrete:
        # tanh(z) > 0.5  <=>  z > atanh(0.5)  (tanh is strictly monotonic).
        # NOTE: torch.where with Python ints yields int64; JAX (no x64) -> int32.
        t = jnp.float32(_ATANH_HALF)
        out_ref[...] = jnp.where(z > t, jnp.int32(1),
                                 jnp.where(z < -t, jnp.int32(-1), jnp.int32(0)))
    else:
        out_ref[...] = jnp.tanh(z).astype(out_ref.dtype)


def state_model_forward(params,
                        parent_article_state, parent_article_strength,
                        parent_comment_state, parent_comment_strength,
                        previous_state,
                        *, is_discrete):
    """Forward pass matching StateModel.forward (output shape (state_dim, 1))."""
    wp, wq, ws, b = params
    state_dim = wp.shape[0]
    out_dtype = jnp.int32 if is_discrete else jnp.float32

    # Layout plumbing (outside the kernel hot path): fused transposed weight,
    # lane-dense row-vector inputs.
    w_cat_t = jnp.concatenate([wp.T, wq.T, ws.T], axis=0)            # (3S, S)
    x_row = jnp.concatenate(
        [parent_article_state.reshape(1, state_dim),
         parent_comment_state.reshape(1, state_dim),
         previous_state.reshape(1, state_dim)], axis=1)              # (1, 3S)
    b_row = b.reshape(1, state_dim)                                  # (1, S)

    pa_str = jnp.asarray(parent_article_strength, jnp.float32).reshape(1)
    pc_str = jnp.asarray(parent_comment_strength, jnp.float32).reshape(1)

    vmem = pl.BlockSpec(memory_space=pltpu.MemorySpace.VMEM)
    smem = pl.BlockSpec(memory_space=pltpu.MemorySpace.SMEM)
    kernel = functools.partial(_state_kernel, is_discrete)

    cost = pl.CostEstimate(
        flops=2 * 3 * state_dim * state_dim + 8 * 3 * state_dim,
        transcendentals=0 if is_discrete else state_dim,
        bytes_accessed=4 * (3 * state_dim * state_dim + 4 * state_dim + 2)
        + state_dim * jnp.dtype(out_dtype).itemsize,
    )

    out_row = pl.pallas_call(
        kernel,
        out_shape=jax.ShapeDtypeStruct((1, state_dim), out_dtype),
        in_specs=[vmem, vmem, vmem, smem, smem],
        out_specs=vmem,
        cost_estimate=cost,
    )(w_cat_t, b_row, x_row, pa_str, pc_str)

    # Back to the module's (state_dim, 1) column-vector convention.
    return out_row.reshape(state_dim, 1)


def _reference_forward(params, pa_state, pa_str, pc_state, pc_str, prev,
                       *, is_discrete):
    wp, wq, ws, b = params
    pred = jnp.tanh(wp @ pa_state * pa_str + wq @ pc_state * pc_str
                    + ws @ prev + b)
    if is_discrete:
        pred = jnp.where(pred > 0.5, 1,
                         jnp.where(pred < -0.5, -1, 0)).astype(jnp.int32)
    return pred


if __name__ == "__main__":
    state_dim = 32
    key = jax.random.PRNGKey(0)
    keys = jax.random.split(key, 9)

    # Deterministic "randn" parameter init (matches the module's __init__ shapes).
    W_p = jax.random.normal(keys[0], (state_dim, state_dim), jnp.float32)
    W_q = jax.random.normal(keys[1], (state_dim, state_dim), jnp.float32)
    W_s = jax.random.normal(keys[2], (state_dim, state_dim), jnp.float32)
    b = jax.random.normal(keys[3], (state_dim, 1), jnp.float32)
    params = (W_p, W_q, W_s, b)

    # Inputs (column vectors + scalar strengths, as in the PyTorch forward).
    parent_article_state = jax.random.normal(keys[4], (state_dim, 1), jnp.float32)
    parent_comment_state = jax.random.normal(keys[5], (state_dim, 1), jnp.float32)
    previous_state = jax.random.normal(keys[6], (state_dim, 1), jnp.float32)
    parent_article_strength = jnp.float32(0.7)
    parent_comment_strength = jnp.float32(0.3)

    # Continuous (is_discrete=False) path.
    out_cont = state_model_forward(
        params, parent_article_state, parent_article_strength,
        parent_comment_state, parent_comment_strength, previous_state,
        is_discrete=False)
    out_cont = jax.block_until_ready(out_cont)
    ref_cont = _reference_forward(
        params, parent_article_state, parent_article_strength,
        parent_comment_state, parent_comment_strength, previous_state,
        is_discrete=False)
    assert out_cont.shape == (state_dim, 1)
    assert jnp.allclose(out_cont, ref_cont, atol=1e-5, rtol=1e-5)

    # Discrete (is_discrete=True) path.
    out_disc = state_model_forward(
        params, parent_article_state, parent_article_strength,
        parent_comment_state, parent_comment_strength, previous_state,
        is_discrete=True)
    out_disc = jax.block_until_ready(out_disc)
    ref_disc = _reference_forward(
        params, parent_article_state, parent_article_strength,
        parent_comment_state, parent_comment_strength, previous_state,
        is_discrete=True)
    assert out_disc.shape == (state_dim, 1)
    assert jnp.array_equal(out_disc, ref_disc)

    print("KERNEL_OK")
</pallas_src>

<mosaic_0001>
module attributes {stable_mosaic.version = 11 : i64} {
  func.func @_state_kernel(%arg0: memref<96x32xf32, #tpu.memory_space<vmem>>, %arg1: memref<1x32xf32, #tpu.memory_space<vmem>>, %arg2: memref<1x96xf32, #tpu.memory_space<vmem>>, %arg3: memref<1xf32, #tpu.memory_space<smem>>, %arg4: memref<1xf32, #tpu.memory_space<smem>>, %arg5: memref<1x32xf32, #tpu.memory_space<vmem>>) attributes {dimension_semantics = [], scalar_prefetch = 0 : i64, scratch_operands = 0 : i64, tpu.core_type = #tpu.core_type<tc>} {
    %c0 = arith.constant 0 : index
    %0 = memref.load %arg3[%c0] : memref<1xf32, #tpu.memory_space<smem>>
    %c0_0 = arith.constant 0 : index
    %1 = memref.load %arg4[%c0_0] : memref<1xf32, #tpu.memory_space<smem>>
    %2 = tpu.iota {dimensions = array<i32: 1>} : vector<1x96xi32>
    %c32_i32 = arith.constant 32 : i32
    %3 = vector.broadcast %c32_i32 : i32 to vector<1x96xi32>
    %4 = arith.cmpi slt, %2, %3 : vector<1x96xi32>
    %c64_i32 = arith.constant 64 : i32
    %5 = vector.broadcast %c64_i32 : i32 to vector<1x96xi32>
    %6 = arith.cmpi slt, %2, %5 : vector<1x96xi32>
    %cst = arith.constant 1.000000e+00 : f32
    %7 = vector.broadcast %1 : f32 to vector<1x96xf32>
    %8 = vector.broadcast %cst : f32 to vector<1x96xf32>
    %9 = arith.select %6, %7, %8 : vector<1x96xi1>, vector<1x96xf32>
    %10 = vector.broadcast %0 : f32 to vector<1x96xf32>
    %11 = arith.select %4, %10, %9 : vector<1x96xi1>, vector<1x96xf32>
    %c0_1 = arith.constant 0 : index
    %c0_2 = arith.constant 0 : index
    %12 = vector.load %arg2[%c0_1, %c0_2] : memref<1x96xf32, #tpu.memory_space<vmem>>, vector<1x96xf32>
    %13 = arith.mulf %12, %11 : vector<1x96xf32>
    %c0_3 = arith.constant 0 : index
    %c0_4 = arith.constant 0 : index
    %14 = vector.load %arg0[%c0_3, %c0_4] : memref<96x32xf32, #tpu.memory_space<vmem>>, vector<96x32xf32>
    %cst_5 = arith.constant dense<0.000000e+00> : vector<1x32xf32>
    %15 = tpu.matmul %13, %14, %cst_5 {dimension_numbers = #tpu.dot_dimension_numbers<[1], [0], [0], [1], [0, 0, 1, 1], [], []>} : vector<1x96xf32>, vector<96x32xf32>, vector<1x32xf32> -> vector<1x32xf32>
    %c0_6 = arith.constant 0 : index
    %c0_7 = arith.constant 0 : index
    %16 = vector.load %arg1[%c0_6, %c0_7] : memref<1x32xf32, #tpu.memory_space<vmem>>, vector<1x32xf32>
    %17 = arith.addf %15, %16 : vector<1x32xf32>
    %18 = math.tanh %17 : vector<1x32xf32>
    %c0_8 = arith.constant 0 : index
    %c0_9 = arith.constant 0 : index
    %19 = vector.load %arg5[%c0_8, %c0_9] : memref<1x32xf32, #tpu.memory_space<vmem>>, vector<1x32xf32>
    tpu.vector_store %arg5[%c0_8, %c0_9], %18 {strides = array<i32>} : memref<1x32xf32, #tpu.memory_space<vmem>>, vector<1x32xf32>,
    return
  }
}

</mosaic_0001>

<llo_original>
// kernel: tpu_custom_call.1
$region0: #{tpu_custom_call.1}
  #allocation0 [shape = 'u32[]', space=smem, size = 0x4, offset = 0x4, fixed_abs, tag = 'smem constant byte address 0x4 - core index']
  #allocation1 [shape = 'u32[144,128]{1,0:T(1,128)}', space=vmem, size = 0x12000, scoped, tag = 'internal scratch']
  #allocation2 [shape = 'f32[1]{0:T(128)S(6)}', space=smem, size = 0x200, scoped, tag = 'scoped memory for tpu_custom_call.1']
  #allocation3 [shape = 'f32[1]{0:T(128)S(6)}', space=smem, size = 0x200, scoped, tag = 'scoped memory for tpu_custom_call.1']
  %s0 = inlined_call_operand.vmem [shape: f32[96,32], index: 0, kind: input, shape index: {}]
  %s1 = inlined_call_operand.vmem [shape: f32[1,32], index: 1, kind: input, shape index: {}]
  %s2 = inlined_call_operand.vmem [shape: f32[1,96], index: 2, kind: input, shape index: {}]
  %s3 = inlined_call_operand.<no memory space> [shape: f32[1], index: 3, kind: input, shape index: {}]
  %s4 = inlined_call_operand.<no memory space> [shape: f32[1], index: 4, kind: input, shape index: {}]
  %s5 = inlined_call_operand.hbm [shape: f32[1,32], index: 5, kind: output, shape index: {}]
  %s6 = sld [smem:[#allocation0]]
  $region30: #{tpu_custom_call.1} parent=0
    _
  %s8 = ssub.s32 1, %s6
  %s9 = scalar_select 0, %s8, %s6
  %10 = sst [smem:[#allocation2]] %s3
  %11 = sst [smem:[#allocation3]] %s4
  $region1: #{tpu_custom_call.1} parent=0
    #allocation4 [shape = 'u8[512]{0}', space=vmem, size = 0x400, scoped, tag = 'output window, operand 0, single buffered']
    #allocation5 [shape = 's32[1]{0}', space=sflag, size = 0x4, scoped, tag = 'scoped memory for tpu_custom_call.1']
    %12 = vsyncpa [#allocation5], 0
    // Predicated region
    $region2: #{tpu_custom_call.1} parent=1 // pred_check
      _
    $region3: #{tpu_custom_call.1} parent=1 // pred_check_branch
      %14 = sbr.rel (0) target = $region5
    $region4: #{tpu_custom_call.1} parent=1 // pred_region
      _
    $region5: #{tpu_custom_call.1} parent=1 // pred_fallthru
      _
    // Predicated region
    $region6: #{tpu_custom_call.1} parent=1 // pred_check
      _
    $region7: #{tpu_custom_call.1} parent=1 // pred_check_branch
      %16 = sbr.rel (0) target = $region9
    $region8: #{tpu_custom_call.1} parent=1 // pred_region
      _
    $region9: #{tpu_custom_call.1} parent=1 // pred_fallthru
      _
    // Predicated region
    $region10: #{tpu_custom_call.1} parent=1 // pred_check
      _
    $region11: #{tpu_custom_call.1} parent=1 // pred_check_branch
      %18 = sbr.rel (0) target = $region13
    $region12: #{tpu_custom_call.1} parent=1 // pred_region
      _
    $region13: #{tpu_custom_call.1} parent=1 // pred_fallthru
      _
    // Predicated region
    $region14: #{tpu_custom_call.1} parent=1 // pred_check
      _
    $region15: #{tpu_custom_call.1} parent=1 // pred_check_branch
      %20 = sbr.rel (0) target = $region17
    $region16: #{tpu_custom_call.1} parent=1 // pred_region
      _
    $region17: #{tpu_custom_call.1} parent=1 // pred_fallthru
      _
    // Predicated region
    $region18: #{tpu_custom_call.1} parent=1 // pred_check
      _
    $region19: #{tpu_custom_call.1} parent=1 // pred_check_branch
      %22 = sbr.rel (0) target = $region21
    $region20: #{tpu_custom_call.1} parent=1 // pred_region
      _
    $region21: #{tpu_custom_call.1} parent=1 // pred_fallthru
      _
    %s23 = sld [smem:[#allocation2]]
    %s24 = sld [smem:[#allocation3]]
    %v25 = vlaneseq
    %v26 = vand.u32 %v25, 127
    %vm27 = vcmp.lt.s32.totalorder %v26, 32
    %vm28 = vcmp.lt.s32.totalorder %v26, 64
    %v29 = vstv %s24
    %v30 = vsel %vm28, %v29, 1.0
    %v31 = vstv %s23
    %v32 = vsel %vm27, %v31, %v30
    %v33 = vld [vmem:[%s2] sm:$0x1]
    %v34 = vmul.f32 %v33, %v32
    %v35 = vld [vmem:[%s0] sm:$0xff]
    %v36 = vld [vmem:[%s0 + $0x8] sm:$0xff]
    %v37 = vld [vmem:[%s0 + $0x10] sm:$0xff]
    %v38 = vld [vmem:[%s0 + $0x18] sm:$0xff]
    %v39 = vld [vmem:[%s0 + $0x20] sm:$0xff]
    %v40 = vld [vmem:[%s0 + $0x28] sm:$0xff]
    %v41 = vld [vmem:[%s0 + $0x30] sm:$0xff]
    %v42 = vld [vmem:[%s0 + $0x38] sm:$0xff]
    %v43 = vld [vmem:[%s0 + $0x40] sm:$0xff]
    %v44 = vld [vmem:[%s0 + $0x48] sm:$0xff]
    %v45 = vld [vmem:[%s0 + $0x50] sm:$0xff]
    %v46 = vld [vmem:[%s0 + $0x58] sm:$0xff]
    %v47 = vld [vmem:[%s1] sm:$0x1]
    %vm48 = vcmask 785408
    %v50 = vsel %vm48, %v34, 0
    %52 = vmatprep.subr.mxu0 0.0
    %53 = vmatpush1.msra.mxu0 %v35
    %54 = vmatprep.subr.mxu0 0.0
    %55 = vmatpush1.msra.mxu0 %v36
    %56 = vmatprep.subr.mxu0 0.0
    %57 = vmatpush1.msra.mxu0 %v37
    %58 = vmatprep.subr.mxu0 0.0
    %59 = vmatpush1.msra.mxu0 %v38
    %60 = vmatprep.subr.mxu0 0.0
    %61 = vmatpush1.msra.mxu0 %v39
    %62 = vmatprep.subr.mxu0 0.0
    %63 = vmatpush1.msra.mxu0 %v40
    %64 = vmatprep.subr.mxu0 0.0
    %65 = vmatpush1.msra.mxu0 %v41
    %66 = vmatprep.subr.mxu0 0.0
    %67 = vmatpush1.msra.mxu0 %v42
    %68 = vmatprep.subr.mxu0 0.0
    %69 = vmatpush1.msra.mxu0 %v43
    %70 = vmatprep.subr.mxu0 0.0
    %71 = vmatpush1.msra.mxu0 %v44
    %72 = vmatprep.subr.mxu0 0.0
    %73 = vmatpush1.msra.mxu0 %v45
    %74 = vmatprep.subr.mxu0 0.0
    %75 = vmatpush1.msra.mxu0 %v46
    %76 = vmatprep.subr.mxu0 0.0
    %77 = vmatpush1.msra.mxu0 0.0
    %78 = vmatprep.subr.mxu0 0.0
    %79 = vmatpush1.msra.mxu0 0.0
    %80 = vmatprep.subr.mxu0 0.0
    %81 = vmatpush1.msra.mxu0 0.0
    %82 = vmatprep.subr.mxu0 0.0
    %83 = vmatpush1.msra.mxu0 0.0
    %84 = vmatprep.subr.mxu0 0.0
    %85 = vmatpush1.msra.mxu0 0.0
    %86 = vmatprep.subr.mxu0 0.0
    %87 = vmatpush1.msra.mxu0 0.0
    %88 = vmatprep.subr.mxu0 0.0
    %89 = vmatpush1.msra.mxu0 0.0
    %90 = vmatprep.subr.mxu0 0.0
    %91 = vmatpush1.msra.mxu0 0.0
    %92 = vmatprep.subr.mxu0 0.0
    %93 = vmatpush1.msra.mxu0 0.0
    %94 = vmatprep.subr.mxu0 0.0
    %95 = vmatpush1.msra.mxu0 0.0
    %96 = vmatprep.subr.mxu0 0.0
    %97 = vmatpush1.msra.mxu0 0.0
    %98 = vmatprep.subr.mxu0 0.0
    %99 = vmatpush1.msra.mxu0 0.0
    %100 = vmatprep.subr.mxu0 0.0
    %101 = vmatpush1.msra.mxu0 0.0
    %102 = vmatprep.subr.mxu0 0.0
    %103 = vmatpush1.msra.mxu0 0.0
    %104 = vmatprep.subr.mxu0 0.0
    %105 = vmatpush1.msra.mxu0 0.0
    %106 = vmatprep.subr.mxu0 0.0
    %107 = vmatpush1.msra.mxu0 0.0
    %108 = vmatprep.subr.mxu0 0.0
    %109 = vmatpush1.msra.mxu0 0.0
    %110 = vmatprep.subr.mxu0 0.0
    %111 = vmatpush1.msra.mxu0 0.0
    %112 = vmatprep.subr.mxu0 0.0
    %113 = vmatpush1.msra.mxu0 0.0
    %114 = vmatprep.subr.mxu0 0.0
    %115 = vmatpush1.msra.mxu0 0.0
    %116 = vmatprep.mubr.f32.mxu0 0.0
    %117 = vmatmul.mubr.f32.gmra.mrb[0].mxu0 %v50
    %v118 = vpop.f32.mrb[0].mxu0
    %v119 = vadd.f32 %v47, %v118
    %v120 = vpop.f32.mrb[0].mxu0
    %121 = vdwg.mxu0
    %v122 = vtanh.pop %v119
    %vm123 = vcmask 253952
    %124 = vst.msk [vmem:[#allocation4] sm:$0x1] %vm123, %v122
    // Predicated region
    $region22: #{tpu_custom_call.1} parent=1 // pred_check
      _
    $region23: #{tpu_custom_call.1} parent=1 // pred_check_branch
      %126 = sbr.rel (0) target = $region25
    $region24: #{tpu_custom_call.1} parent=1 // pred_region
      %s128 = ssub.s32 16, 16
      %129 = vsyncadd [#allocation5], %s128
      %s131 = sshll.u32 [#allocation4], 4
      %s132 = int_to_ptr.vmem [resolvable:$true] %s131
      %134 = dma.vmem_to_hbm [thread:$0]  %s132, 16, %s5, [#allocation5]
    $region25: #{tpu_custom_call.1} parent=1 // pred_fallthru
      _
    // Predicated region
    $region26: #{tpu_custom_call.1} parent=1 // pred_check
      _
    $region27: #{tpu_custom_call.1} parent=1 // pred_check_branch
      %136 = sbr.rel (0) target = $region29
    $region28: #{tpu_custom_call.1} parent=1 // pred_region
      %137 = dma.done [#allocation5], 16
    $region29: #{tpu_custom_call.1} parent=1 // pred_fallthru
      _
    %138 = vsyncpa [#allocation5], 1

</llo_original>
